<compile_context>
chip_gen: v6e
topology: v6e:2x2x1
jax: 0.10.0
libtpu: 0.0.40
codegen_flags: <defaults>
</compile_context>

<pallas_src>
import functools

import jax
import jax.numpy as jnp
from jax.experimental import pallas as pl
from jax.experimental.pallas import tpu as pltpu

_LANES = 128
_SUBLANES = 8


def _focal_loss_kernel(x_ref, t_ref, o_ref, *, gamma, gamma_is_int,
                       binary_targets, full_rows, tail, block_rows,
                       blocks_per_core):
    c = pl.program_id(0)          # "core" (parallel) axis
    i = pl.program_id(1)          # reduction axis

    @pl.when(i == 0)
    def _init():
        o_ref[...] = jnp.zeros_like(o_ref)

    x = x_ref[...].astype(jnp.float32)
    t = t_ref[...].astype(jnp.float32)

    # ---- stable BCE-with-logits (same algebra as the torch module) --------
    # max_val = max(-x, 0);  exp(-max_val) + exp(-x - max_val) == 1 + exp(-|x|)
    e_x = jnp.exp(-jnp.abs(x))                 # exp(-|x|)
    softplus_x = jnp.log1p(e_x)                # log(1 + exp(-|x|))
    xt = x * t
    bce = x - xt + jnp.maximum(-x, 0.0) + softplus_x

    # ---- focal weight: exp(gamma * logsigmoid(z)),  z = -x*(2t-1) ---------
    z = x - 2.0 * xt
    if binary_targets:
        # t in {0,1}  =>  |z| == |x|: reuse exp(-|x|) / log1p(exp(-|x|)).
        e_z = e_x
        log1p_e_z = softplus_x
    else:
        e_z = jnp.exp(-jnp.abs(z))
        log1p_e_z = None
    min_z = jnp.minimum(z, 0.0)

    if gamma_is_int:
        g = int(gamma)
        if g == 0:
            weight = jnp.ones_like(bce)
        else:
            # sigmoid(z)^g = exp(g*min(z,0)) / (1 + exp(-|z|))^g   (stable)
            numer = jnp.exp(min_z * float(g))
            base = 1.0 + e_z
            denom = base
            for _ in range(g - 1):
                denom = denom * base
            weight = numer / denom             # exact divide (accuracy > approx)
    else:
        if log1p_e_z is None:
            log1p_e_z = jnp.log1p(e_z)
        weight = jnp.exp((min_z - log1p_e_z) * gamma)

    loss = weight * bce

    # ---- accumulate lane/sublane-preserving partial sums into o_ref -------
    gb = c * blocks_per_core + i               # logical global block index
    fully_valid = (gb + 1) * block_rows <= full_rows

    def _partial(v):
        # (block_rows,128) -> (block_rows/8, 8, 128): pure vreg regrouping,
        # reduced with VPU adds only (no XLU).
        return v.reshape(block_rows // _SUBLANES, _SUBLANES, _LANES).sum(axis=0)

    @pl.when(fully_valid)
    def _acc_fast():                           # interior blocks: no mask work
        o_ref[...] += _partial(loss)

    @pl.when(jnp.logical_not(fully_valid))
    def _acc_masked():                         # tail / out-of-range blocks
        r = gb * block_rows + jax.lax.broadcasted_iota(jnp.int32, loss.shape, 0)
        if tail == 0:
            valid = r < full_rows
        else:
            l = jax.lax.broadcasted_iota(jnp.int32, loss.shape, 1)
            valid = (r < full_rows) | ((r == full_rows) & (l < tail))
        o_ref[...] += _partial(jnp.where(valid, loss, 0.0))


def _num_tensorcores_hint():
    # 2 TensorCores/chip only on v7x; returning 1 is always safe.
    try:
        kind = jax.devices()[0].device_kind.lower()
    except Exception:
        return 1
    return 2 if any(s in kind for s in ("v7", "tpu7", "7x")) else 1


def focal_loss(logits, targets, gamma=2.0, *, max_block_rows=4096,
               binary_targets=False, num_parallel=None):
    """Mean binary focal loss over all elements; matches the torch module."""
    if logits.shape != targets.shape:
        raise ValueError(
            "Target size ({}) must be the same as input size ({})".format(
                targets.shape, logits.shape))

    n = int(logits.size)
    x = logits.reshape(-1)            # native dtype; cast happens in-kernel
    t = targets.reshape(-1)

    rows = pl.cdiv(n, _LANES)
    max_block_rows = max(_SUBLANES, (max_block_rows // _SUBLANES) * _SUBLANES)
    if rows <= max_block_rows:
        rows_p = ((rows + _SUBLANES - 1) // _SUBLANES) * _SUBLANES
        block_rows = rows_p                        # single block == whole array
    else:
        rows_p = rows                              # ragged final block, no row pad
        block_rows = max_block_rows

    pad = rows_p * _LANES - n                      # 0 when n % 128 == 0 (big case)
    if pad:
        x = jnp.pad(x, (0, pad))
        t = jnp.pad(t, (0, pad))
    x = x.reshape(rows_p, _LANES)
    t = t.reshape(rows_p, _LANES)

    total_blocks = pl.cdiv(rows_p, block_rows)
    if num_parallel is None:
        num_parallel = _num_tensorcores_hint()
    num_parallel = max(1, min(int(num_parallel), total_blocks))
    blocks_per_core = pl.cdiv(total_blocks, num_parallel)

    if total_blocks % num_parallel == 0:
        def in_map(c, i):
            return (c * blocks_per_core + i, 0)
    else:
        def in_map(c, i):
            # Clamp overhanging logical blocks onto a real block; the kernel
            # fully masks their contribution, so no double counting.
            return (jnp.minimum(c * blocks_per_core + i, total_blocks - 1), 0)

    kernel = functools.partial(
        _focal_loss_kernel,
        gamma=float(gamma),
        gamma_is_int=(float(gamma) == int(gamma) and 0 <= int(gamma) <= 16),
        binary_targets=bool(binary_targets),
        full_rows=n // _LANES,
        tail=n % _LANES,
        block_rows=block_rows,
        blocks_per_core=blocks_per_core,
    )

    partial_sums = pl.pallas_call(
        kernel,
        out_shape=jax.ShapeDtypeStruct((num_parallel * _SUBLANES, _LANES),
                                       jnp.float32),
        grid=(num_parallel, blocks_per_core),
        in_specs=[pl.BlockSpec((block_rows, _LANES), in_map),
                  pl.BlockSpec((block_rows, _LANES), in_map)],
        out_specs=pl.BlockSpec((_SUBLANES, _LANES), lambda c, i: (c, 0)),
        compiler_params=pltpu.CompilerParams(
            dimension_semantics=("parallel", "arbitrary")),
    )(x, t)

    # Tiny final cross-lane / cross-core reduction + mean (cheap XLA op).
    return jnp.sum(partial_sums) * (1.0 / n)


def focal_loss_ref(logits, targets, gamma=2.0):
    """Literal JAX translation of the PyTorch FocalLoss.forward (reference)."""
    logits = logits.astype(jnp.float32)
    targets = targets.astype(jnp.float32)
    max_val = jnp.maximum(-logits, 0.0)
    loss = (logits - logits * targets + max_val
            + jnp.log(jnp.exp(-max_val) + jnp.exp(-logits - max_val)))
    invprobs = jax.nn.log_sigmoid(-logits * (targets * 2.0 - 1.0))
    loss = jnp.exp(invprobs * gamma) * loss
    return loss.mean()


if __name__ == "__main__":
    key = jax.random.PRNGKey(0)
    k1, k2 = jax.random.split(key)
    # Small shapes consistent with the segmentation use-case: (B, C, H, W).
    shape = (2, 4, 16, 16)
    logits = jax.random.normal(k1, shape, dtype=jnp.float32) * 2.0
    targets = (jax.random.uniform(k2, shape) > 0.5).astype(jnp.float32)

    # Default path (integer gamma=2, general targets).
    loss = jax.block_until_ready(focal_loss(logits, targets, gamma=2.0))
    ref = focal_loss_ref(logits, targets, gamma=2.0)
    assert loss.shape == (), loss.shape
    assert bool(jnp.isfinite(loss))
    assert jnp.allclose(loss, ref, rtol=1e-4, atol=1e-5), (loss, ref)

    # Binary-target fast path (one fewer transcendental per element).
    loss_b = jax.block_until_ready(
        focal_loss(logits, targets, gamma=2.0, binary_targets=True))
    assert jnp.allclose(loss_b, ref, rtol=1e-4, atol=1e-5), (loss_b, ref)

    # Non-integer gamma fallback path.
    loss_g = jax.block_until_ready(focal_loss(logits, targets, gamma=1.5))
    ref_g = focal_loss_ref(logits, targets, gamma=1.5)
    assert jnp.allclose(loss_g, ref_g, rtol=1e-4, atol=1e-5), (loss_g, ref_g)

    print("KERNEL_OK")
</pallas_src>

<mosaic_0001>
module attributes {stable_mosaic.version = 11 : i64} {
  func.func @_focal_loss_kernel(%arg0: i32, %arg1: i32, %arg2: memref<16x128xf32, #tpu.memory_space<vmem>>, %arg3: memref<16x128xf32, #tpu.memory_space<vmem>>, %arg4: memref<8x128xf32, #tpu.memory_space<vmem>>) attributes {dimension_semantics = [#tpu.dimension_semantics<parallel>, #tpu.dimension_semantics<arbitrary>], iteration_bounds = array<i64: 1, 1>, scalar_prefetch = 0 : i64, scratch_operands = 0 : i64, tpu.core_type = #tpu.core_type<tc>, window_params = [{transform_indices = @transform_0, window_bounds = array<i64: 16, 128>}, {transform_indices = @transform_1, window_bounds = array<i64: 16, 128>}, {transform_indices = @transform_2, window_bounds = array<i64: 8, 128>}]} {
    %c0_i32 = arith.constant 0 : i32
    %0 = arith.cmpi eq, %arg1, %c0_i32 : i32
    %1 = arith.extui %0 : i1 to i32
    %c0_i32_0 = arith.constant 0 : i32
    %2 = arith.cmpi ne, %1, %c0_i32_0 : i32
    scf.if %2 {
      %cst_15 = arith.constant 0.000000e+00 : f32
      %45 = vector.broadcast %cst_15 : f32 to vector<8x128xf32>
      %c0_16 = arith.constant 0 : index
      %c0_17 = arith.constant 0 : index
      %46 = vector.load %arg4[%c0_16, %c0_17] : memref<8x128xf32, #tpu.memory_space<vmem>>, vector<8x128xf32>
      tpu.vector_store %arg4[%c0_16, %c0_17], %45 {strides = array<i32>} : memref<8x128xf32, #tpu.memory_space<vmem>>, vector<8x128xf32>,
    } else {
    }
    %c0 = arith.constant 0 : index
    %c0_1 = arith.constant 0 : index
    %3 = vector.load %arg2[%c0, %c0_1] : memref<16x128xf32, #tpu.memory_space<vmem>>, vector<16x128xf32>
    %c0_2 = arith.constant 0 : index
    %c0_3 = arith.constant 0 : index
    %4 = vector.load %arg3[%c0_2, %c0_3] : memref<16x128xf32, #tpu.memory_space<vmem>>, vector<16x128xf32>
    %5 = math.absf %3 : vector<16x128xf32>
    %cst = arith.constant 0.000000e+00 : f32
    %6 = vector.broadcast %cst : f32 to vector<16x128xf32>
    %7 = arith.subf %6, %5 : vector<16x128xf32>
    %8 = math.exp %7 : vector<16x128xf32>
    %9 = math.log1p %8 : vector<16x128xf32>
    %10 = arith.mulf %3, %4 : vector<16x128xf32>
    %11 = arith.subf %3, %10 : vector<16x128xf32>
    %cst_4 = arith.constant 0.000000e+00 : f32
    %12 = vector.broadcast %cst_4 : f32 to vector<16x128xf32>
    %13 = arith.subf %12, %3 : vector<16x128xf32>
    %cst_5 = arith.constant 0.000000e+00 : f32
    %14 = vector.broadcast %cst_5 : f32 to vector<16x128xf32>
    %15 = arith.maximumf %13, %14 : vector<16x128xf32>
    %16 = arith.addf %11, %15 : vector<16x128xf32>
    %17 = arith.addf %16, %9 : vector<16x128xf32>
    %cst_6 = arith.constant 2.000000e+00 : f32
    %18 = vector.broadcast %cst_6 : f32 to vector<16x128xf32>
    %19 = arith.mulf %18, %10 : vector<16x128xf32>
    %20 = arith.subf %3, %19 : vector<16x128xf32>
    %21 = math.absf %20 : vector<16x128xf32>
    %cst_7 = arith.constant 0.000000e+00 : f32
    %22 = vector.broadcast %cst_7 : f32 to vector<16x128xf32>
    %23 = arith.subf %22, %21 : vector<16x128xf32>
    %24 = math.exp %23 : vector<16x128xf32>
    %cst_8 = arith.constant 0.000000e+00 : f32
    %25 = vector.broadcast %cst_8 : f32 to vector<16x128xf32>
    %26 = arith.minimumf %20, %25 : vector<16x128xf32>
    %cst_9 = arith.constant 2.000000e+00 : f32
    %27 = vector.broadcast %cst_9 : f32 to vector<16x128xf32>
    %28 = arith.mulf %26, %27 : vector<16x128xf32>
    %29 = math.exp %28 : vector<16x128xf32>
    %cst_10 = arith.constant 1.000000e+00 : f32
    %30 = vector.broadcast %cst_10 : f32 to vector<16x128xf32>
    %31 = arith.addf %30, %24 : vector<16x128xf32>
    %32 = arith.mulf %31, %31 : vector<16x128xf32>
    %33 = arith.divf %29, %32 : vector<16x128xf32>
    %34 = arith.mulf %33, %17 : vector<16x128xf32>
    %c1_i32 = arith.constant 1 : i32
    %35 = arith.muli %arg0, %c1_i32 : i32
    %36 = arith.addi %35, %arg1 : i32
    %c1_i32_11 = arith.constant 1 : i32
    %37 = arith.addi %36, %c1_i32_11 : i32
    %c16_i32 = arith.constant 16 : i32
    %38 = arith.muli %37, %c16_i32 : i32
    %c16_i32_12 = arith.constant 16 : i32
    %39 = arith.cmpi sle, %38, %c16_i32_12 : i32
    %40 = arith.extui %39 : i1 to i32
    %c0_i32_13 = arith.constant 0 : i32
    %41 = arith.cmpi ne, %40, %c0_i32_13 : i32
    scf.if %41 {
      %c0_15 = arith.constant 0 : index
      %c0_16 = arith.constant 0 : index
      %45 = vector.load %arg4[%c0_15, %c0_16] : memref<8x128xf32, #tpu.memory_space<vmem>>, vector<8x128xf32>
      %46 = vector.shape_cast %34 : vector<16x128xf32> to vector<2x8x128xf32>
      %cst_17 = arith.constant dense<0.000000e+00> : vector<8x128xf32>
      %47 = vector.multi_reduction <add>, %46, %cst_17 [0] : vector<2x8x128xf32> to vector<8x128xf32>
      %48 = arith.addf %45, %47 : vector<8x128xf32>
      %c0_18 = arith.constant 0 : index
      %c0_19 = arith.constant 0 : index
      %49 = vector.load %arg4[%c0_18, %c0_19] : memref<8x128xf32, #tpu.memory_space<vmem>>, vector<8x128xf32>
      tpu.vector_store %arg4[%c0_18, %c0_19], %48 {strides = array<i32>} : memref<8x128xf32, #tpu.memory_space<vmem>>, vector<8x128xf32>,
    } else {
    }
    %true = arith.constant true
    %42 = arith.xori %39, %true : i1
    %43 = arith.extui %42 : i1 to i32
    %c0_i32_14 = arith.constant 0 : i32
    %44 = arith.cmpi ne, %43, %c0_i32_14 : i32
    scf.if %44 {
      %c16_i32_15 = arith.constant 16 : i32
      %45 = arith.muli %36, %c16_i32_15 : i32
      %46 = tpu.iota {dimensions = array<i32: 0>} : vector<16x128xi32>
      %47 = vector.broadcast %45 : i32 to vector<16x128xi32>
      %48 = arith.addi %47, %46 : vector<16x128xi32>
      %c16_i32_16 = arith.constant 16 : i32
      %49 = vector.broadcast %c16_i32_16 : i32 to vector<16x128xi32>
      %50 = arith.cmpi slt, %48, %49 : vector<16x128xi32>
      %c0_17 = arith.constant 0 : index
      %c0_18 = arith.constant 0 : index
      %51 = vector.load %arg4[%c0_17, %c0_18] : memref<8x128xf32, #tpu.memory_space<vmem>>, vector<8x128xf32>
      %cst_19 = arith.constant 0.000000e+00 : f32
      %52 = vector.broadcast %cst_19 : f32 to vector<16x128xf32>
      %53 = arith.select %50, %34, %52 : vector<16x128xi1>, vector<16x128xf32>
      %54 = vector.shape_cast %53 : vector<16x128xf32> to vector<2x8x128xf32>
      %cst_20 = arith.constant dense<0.000000e+00> : vector<8x128xf32>
      %55 = vector.multi_reduction <add>, %54, %cst_20 [0] : vector<2x8x128xf32> to vector<8x128xf32>
      %56 = arith.addf %51, %55 : vector<8x128xf32>
      %c0_21 = arith.constant 0 : index
      %c0_22 = arith.constant 0 : index
      %57 = vector.load %arg4[%c0_21, %c0_22] : memref<8x128xf32, #tpu.memory_space<vmem>>, vector<8x128xf32>
      tpu.vector_store %arg4[%c0_21, %c0_22], %56 {strides = array<i32>} : memref<8x128xf32, #tpu.memory_space<vmem>>, vector<8x128xf32>,
    } else {
    }
    return
  }
  func.func @transform_0(%arg0: i32, %arg1: i32) -> (i32, i32) {
    %c1_i32 = arith.constant 1 : i32
    %0 = arith.muli %arg0, %c1_i32 : i32
    %1 = arith.addi %0, %arg1 : i32
    %c0_i32 = arith.constant 0 : i32
    %c0_i32_0 = arith.constant 0 : i32
    return %1, %c0_i32 : i32, i32
  }
  func.func @transform_1(%arg0: i32, %arg1: i32) -> (i32, i32) {
    %c1_i32 = arith.constant 1 : i32
    %0 = arith.muli %arg0, %c1_i32 : i32
    %1 = arith.addi %0, %arg1 : i32
    %c0_i32 = arith.constant 0 : i32
    %c0_i32_0 = arith.constant 0 : i32
    return %1, %c0_i32 : i32, i32
  }
  func.func @transform_2(%arg0: i32, %arg1: i32) -> (i32, i32) {
    %c0_i32 = arith.constant 0 : i32
    %c0_i32_0 = arith.constant 0 : i32
    return %arg0, %c0_i32 : i32, i32
  }
}

</mosaic_0001>

<llo_original>
// kernel: tpu_custom_call.1
$region0: #{tpu_custom_call.1}
  #allocation0 [shape = 'u32[]', space=smem, size = 0x4, offset = 0x4, fixed_abs, tag = 'smem constant byte address 0x4 - core index']
  #allocation1 [shape = 'u32[144,128]{1,0:T(1,128)}', space=vmem, size = 0x12000, scoped, tag = 'internal scratch']
  %s0 = inlined_call_operand.hbm [shape: f32[16,128], index: 0, kind: input, shape index: {}]
  %s1 = inlined_call_operand.hbm [shape: f32[16,128], index: 1, kind: input, shape index: {}]
  %s2 = inlined_call_operand.hbm [shape: f32[8,128], index: 2, kind: output, shape index: {}]
  %s3 = sld [smem:[#allocation0]]
  $region38: #{tpu_custom_call.1} parent=0
    _
  %s5 = ssub.s32 1, %s3
  %s6 = scalar_select 0, %s5, %s3
  $region1: #{tpu_custom_call.1} parent=0
    #allocation2 [shape = 'u8[8192]{0}', space=vmem, size = 0x2000, scoped, tag = 'input window, operand 0, single buffered']
    #allocation3 [shape = 's32[1]{0}', space=sflag, size = 0x4, scoped, tag = 'scoped memory for tpu_custom_call.1']
    #allocation4 [shape = 's32[1]{0}', space=sflag, size = 0x4, scoped, tag = 'scoped memory for tpu_custom_call.1']
    #allocation5 [shape = 'u8[8192]{0}', space=vmem, size = 0x2000, scoped, tag = 'input window, operand 1, single buffered']
    #allocation6 [shape = 's32[1]{0}', space=sflag, size = 0x4, scoped, tag = 'scoped memory for tpu_custom_call.1']
    #allocation7 [shape = 'u8[4096]{0}', space=vmem, size = 0x1000, scoped, tag = 'output window, operand 0, single buffered']
    %7 = vsyncpa [#allocation3], 0
    %8 = vsyncpa [#allocation6], 0
    %9 = vsyncpa [#allocation4], 0
    // Predicated region
    $region2: #{tpu_custom_call.1} parent=1 // pred_check
      _
    $region3: #{tpu_custom_call.1} parent=1 // pred_check_branch
      %11 = sbr.rel (0) target = $region5
    $region4: #{tpu_custom_call.1} parent=1 // pred_region
      %s12 = sadd.s32 0, 0
      %s13 = smul.u32 2, %s12
      %s15 = ssub.s32 256, 256
      %16 = vsyncadd [#allocation3], %s15
      %s17 = smul.addr %s13, 128
      %s18 = scalar_lea.hbm %s0, %s17
      %s19 = sshll.u32 [#allocation2], 4
      %s20 = int_to_ptr.vmem [resolvable:$true] %s19
      %25 = dma.hbm_to_vmem [thread:$0]  %s18, 256, %s20, [#allocation3], 128, 128, 8
    $region5: #{tpu_custom_call.1} parent=1 // pred_fallthru
      _
    // Predicated region
    $region6: #{tpu_custom_call.1} parent=1 // pred_check
      _
    $region7: #{tpu_custom_call.1} parent=1 // pred_check_branch
      %27 = sbr.rel (0) target = $region9
    $region8: #{tpu_custom_call.1} parent=1 // pred_region
      %s28 = sadd.s32 0, 0
      %s29 = smul.u32 2, %s28
      %s31 = ssub.s32 256, 256
      %32 = vsyncadd [#allocation6], %s31
      %s33 = smul.addr %s29, 128
      %s34 = scalar_lea.hbm %s1, %s33
      %s35 = sshll.u32 [#allocation5], 4
      %s36 = int_to_ptr.vmem [resolvable:$true] %s35
      %41 = dma.hbm_to_vmem [thread:$0]  %s34, 256, %s36, [#allocation6], 128, 128, 8
    $region9: #{tpu_custom_call.1} parent=1 // pred_fallthru
      _
    // Predicated region
    $region10: #{tpu_custom_call.1} parent=1 // pred_check
      _
    $region11: #{tpu_custom_call.1} parent=1 // pred_check_branch
      %43 = sbr.rel (0) target = $region13
    $region12: #{tpu_custom_call.1} parent=1 // pred_region
      %44 = dma.done [#allocation3], 256
    $region13: #{tpu_custom_call.1} parent=1 // pred_fallthru
      _
    // Predicated region
    $region14: #{tpu_custom_call.1} parent=1 // pred_check
      _
    $region15: #{tpu_custom_call.1} parent=1 // pred_check_branch
      %46 = sbr.rel (0) target = $region17
    $region16: #{tpu_custom_call.1} parent=1 // pred_region
      %47 = dma.done [#allocation6], 256
    $region17: #{tpu_custom_call.1} parent=1 // pred_fallthru
      _
    %s48 = sadd.s32 0, 0
    %s49 = smul.u32 2, %s48
    %s50 = sadd.s32 0, 0
    %s51 = smul.u32 2, %s50
    %p52 = scmp.eq.s32.totalorder 0, 0
    // Predicated region
    $region18: #{tpu_custom_call.1} parent=1 // pred_check
      %p53 = pneg %p52
    $region19: #{tpu_custom_call.1} parent=1 // pred_check_branch
      %55 = sbr.rel (%p53) target = $region21
    $region20: #{tpu_custom_call.1} parent=1 // pred_region
      %56 = vst [vmem:[#allocation7] sm:$0xff] 0.0
    $region21: #{tpu_custom_call.1} parent=1 // pred_fallthru
      _
    %v57 = vld [vmem:[#allocation2] sm:$0xff]
    %v58 = vld [vmem:[#allocation2 + $0x8] sm:$0xff]
    %v59 = vld [vmem:[#allocation5] sm:$0xff]
    %v60 = vld [vmem:[#allocation5 + $0x8] sm:$0xff]
    %v61 = vand.u32 2147483647, %v57
    %v62 = vand.u32 2147483647, %v58
    %v63 = vsub.f32 0.0, %v61
    %v64 = vsub.f32 0.0, %v62
    %v65 = vmul.f32 %v63, 1.442695
    %v66 = vpow.pop %v65
    %v67 = vmul.f32 %v64, 1.442695
    %v68 = vpow.pop %v67
    %v69 = vadd.f32 %v66, 1.0
    %v70 = vlog2.pop %v69
    %v71 = vmul.f32 %v70, 0.6931472
    %v72 = vmul.f32 -0.5, %v66
    %v73 = vadd.f32 %v72, 1.0
    %v74 = vmul.f32 %v73, %v66
    %v75 = vand.u32 2147483647, %v66
    %vm76 = vcmp.lt.f32.partialorder %v75, 0.0004427343
    %v77 = vsel %vm76, %v74, %v71
    %v78 = vadd.f32 %v68, 1.0
    %v79 = vlog2.pop %v78
    %v80 = vmul.f32 %v79, 0.6931472
    %v81 = vmul.f32 -0.5, %v68
    %v82 = vadd.f32 %v81, 1.0
    %v83 = vmul.f32 %v82, %v68
    %v84 = vand.u32 2147483647, %v68
    %vm85 = vcmp.lt.f32.partialorder %v84, 0.0004427343
    %v86 = vsel %vm85, %v83, %v80
    %v87 = vmul.f32 %v57, %v59
    %v88 = vmul.f32 %v58, %v60
    %v89 = vsub.f32 %v57, %v87
    %v90 = vsub.f32 %v58, %v88
    %v91 = vsub.f32 0.0, %v57
    %v92 = vsub.f32 0.0, %v58
    %v93 = vmax.f32 %v91, 0.0
    %v94 = vmax.f32 %v92, 0.0
    %v95 = vadd.f32 %v89, %v93
    %v96 = vadd.f32 %v90, %v94
    %v97 = vadd.f32 %v95, %v77
    %v98 = vadd.f32 %v96, %v86
    %v99 = vmul.f32 %v87, 2.0
    %v100 = vmul.f32 %v88, 2.0
    %v101 = vsub.f32 %v57, %v99
    %v102 = vsub.f32 %v58, %v100
    %v103 = vand.u32 2147483647, %v101
    %v104 = vand.u32 2147483647, %v102
    %v105 = vsub.f32 0.0, %v103
    %v106 = vsub.f32 0.0, %v104
    %v107 = vmul.f32 %v105, 1.442695
    %v108 = vpow.pop %v107
    %v109 = vmul.f32 %v106, 1.442695
    %v110 = vpow.pop %v109
    %v111 = vmin.f32 %v101, 0.0
    %v112 = vmin.f32 %v102, 0.0
    %v113 = vmul.f32 %v111, 2.0
    %v114 = vmul.f32 %v112, 2.0
    %v115 = vmul.f32 %v113, 1.442695
    %v116 = vpow.pop %v115
    %v117 = vmul.f32 %v114, 1.442695
    %v118 = vpow.pop %v117
    %v119 = vadd.f32 %v108, 1.0
    %v120 = vadd.f32 %v110, 1.0
    %v121 = vmul.f32 %v119, %v119
    %v122 = vmul.f32 %v120, %v120
    %v123 = vrcp.pop %v121
    %v124 = vmul.f32 %v116, %v123
    %v125 = vrcp.pop %v122
    %v126 = vmul.f32 %v118, %v125
    %v127 = vmul.f32 %v124, %v97
    %v128 = vmul.f32 %v126, %v98
    %s129 = sadd.s32 0, 0
    %s130 = sadd.s32 %s129, 1
    %s131 = smul.u32 %s130, 16
    %p132 = scmp.le.s32.totalorder %s131, 16
    // Predicated region
    $region22: #{tpu_custom_call.1} parent=1 // pred_check
      %p133 = pneg %p132
    $region23: #{tpu_custom_call.1} parent=1 // pred_check_branch
      %135 = sbr.rel (%p133) target = $region25
    $region24: #{tpu_custom_call.1} parent=1 // pred_region
      %v136 = vld [vmem:[#allocation7] sm:$0xff]
      %v137 = vadd.f32 %v127, %v128
      %v138 = vadd.f32 %v136, %v137
      %139 = vst [vmem:[#allocation7] sm:$0xff] %v138
    $region25: #{tpu_custom_call.1} parent=1 // pred_fallthru
      _
    %p140 = scmp.gt.s32.totalorder %s131, 16
    // Predicated region
    $region26: #{tpu_custom_call.1} parent=1 // pred_check
      %p141 = pneg %p140
    $region27: #{tpu_custom_call.1} parent=1 // pred_check_branch
      %143 = sbr.rel (%p141) target = $region29
    $region28: #{tpu_custom_call.1} parent=1 // pred_region
      %s144 = smul.u32 %s129, 16
      %v145 = vlaneseq
      %v146 = vshrl.u32 %v145, 7
      %v147 = vadd.s32 %v146, 8
      %v148 = vstv %s144
      %v149 = vadd.s32 %v148, %v146
      %v150 = vadd.s32 %v148, %v147
      %vm151 = vcmp.lt.s32.totalorder %v149, 16
      %vm152 = vcmp.lt.s32.totalorder %v150, 16
      %v153 = vld [vmem:[#allocation7] sm:$0xff]
      %v154 = vsel %vm151, %v127, 0.0
      %v155 = vsel %vm152, %v128, 0.0
      %v156 = vadd.f32 %v154, %v155
      %v157 = vadd.f32 %v153, %v156
      %158 = vst [vmem:[#allocation7] sm:$0xff] %v157
    $region29: #{tpu_custom_call.1} parent=1 // pred_fallthru
      _
    // Predicated region
    $region30: #{tpu_custom_call.1} parent=1 // pred_check
      _
    $region31: #{tpu_custom_call.1} parent=1 // pred_check_branch
      %160 = sbr.rel (0) target = $region33
    $region32: #{tpu_custom_call.1} parent=1 // pred_region
      %s162 = ssub.s32 128, 128
      %163 = vsyncadd [#allocation4], %s162
      %s165 = sshll.u32 [#allocation7], 4
      %s166 = int_to_ptr.vmem [resolvable:$true] %s165
      %168 = dma.vmem_to_hbm [thread:$0]  %s166, 128, %s2, [#allocation4]
    $region33: #{tpu_custom_call.1} parent=1 // pred_fallthru
      _
    // Predicated region
    $region34: #{tpu_custom_call.1} parent=1 // pred_check
      _
    $region35: #{tpu_custom_call.1} parent=1 // pred_check_branch
      %170 = sbr.rel (0) target = $region37
    $region36: #{tpu_custom_call.1} parent=1 // pred_region
      %171 = dma.done [#allocation4], 128
    $region37: #{tpu_custom_call.1} parent=1 // pred_fallthru
      _
    %172 = vsyncpa [#allocation3], 1
    %173 = vsyncpa [#allocation6], 1
    %174 = vsyncpa [#allocation4], 1

</llo_original>
